<compile_context>
chip_gen: v6e
topology: v6e:2x2x1
jax: 0.10.0
libtpu: 0.0.40
codegen_flags: <defaults>
</compile_context>

<pallas_src>
from functools import partial

import jax
import jax.numpy as jnp
from jax.experimental import pallas as pl
from jax.experimental.pallas import tpu as pltpu


def lstm_kernel(x_ref, wx_ref, wh_ref, b_ref, gs_ref, go_ref, wp_ref, bp_ref,
                out_ref):
    TB, S = x_ref.shape          # batch tile, sequence length (both static)
    HP = wh_ref.shape[0]         # packed gate width = 4 * Hb (multiple of 128)
    Hb = HP // 4                 # per-gate sub-block width (lanes)

    x = x_ref[...]               # (TB, S)   -- one small vreg, fine to keep live
    wx = wx_ref[...]             # (1, HP)
    b = b_ref[...]               # (1, HP)
    gs = gs_ref[...]             # (1, HP)   post-tanh per-lane scale
    go = go_ref[...]             # (1, HP)   post-tanh per-lane offset

    h = jnp.zeros((TB, HP), jnp.float32)
    c = jnp.zeros((TB, HP), jnp.float32)

    # Fully unrolled recurrence (S is static and small).  Per-step temporaries
    # are a handful of (TB, HP) vregs, so the unroll does not blow up live
    # ranges; Wh is streamed from its ref into the MXU each step.
    for t in range(S):
        # Input projection (VPU broadcast-FMA) + recurrent matmul (MXU).
        z = x[:, t:t + 1] * wx + b + jnp.dot(
            h, wh_ref[...], preferred_element_type=jnp.float32)
        # One packed tanh covers all four gates; per-lane affine turns the
        # sigmoid blocks (pre-scaled by 0.5) into 0.5*tanh(z/2)+0.5 = sigmoid(z).
        act = jnp.tanh(z) * gs + go          # lanes: [ f | g | o | i ] values
        f_ = act                             # forget gate already at lanes 0..Hb-1
        o_ = pltpu.roll(act, 2 * Hb, 1)      # output gate (direction-agnostic shift)
        p_ = pltpu.roll(act, 1 * Hb, 1)      # {p_, q_} = {g, i} aligned to lanes
        q_ = pltpu.roll(act, 3 * Hb, 1)      #   0..Hb-1 (order irrelevant: g*i)
        c = p_ * q_ + c * f_
        h = jnp.tanh(c) * o_
        # Lanes >= H of c/h hold bounded junk; Wh/Wp rows >= H are zero, so it
        # can never reach the matmul results.

    # Output projection of the last hidden state; lane-dense (TB, Cp) store.
    out_ref[...] = (jnp.dot(h, wp_ref[...], preferred_element_type=jnp.float32)
                    + bp_ref[...])


def _round_up(n, m):
    return ((n + m - 1) // m) * m


def prepare_lstm_params(params):
    """One-time packing of the module parameters (NOT on the per-call hot path)."""
    (W_gx, W_gh, b_g, W_ix, W_ih, b_i,
     W_fx, W_fh, b_f, W_ox, W_oh, b_o, W_ph, b_p) = params

    H, I = W_gx.shape
    C = W_ph.shape[0]
    # The PyTorch forward does x[:, t:t+1] @ W_*x.t() => input_dim == 1.
    assert I == 1, "LSTM forward (x[:, t:t+1]) implies input_dim == 1"

    Hb = _round_up(H, 32)        # per-gate sub-block width
    HP = 4 * Hb                  # packed gate width (multiple of 128)
    assert HP % 128 == 0
    Cp = _round_up(C, 128)

    # Block order [f, g, o, i]; sigmoid gates pre-scaled by 0.5, with the
    # remaining post-tanh affine carried by gate_scale / gate_offset.
    order = [(W_fx, W_fh, b_f, 0.5),   # block 0: forget  (sigmoid)
             (W_gx, W_gh, b_g, 1.0),   # block 1: g       (tanh)
             (W_ox, W_oh, b_o, 0.5),   # block 2: output  (sigmoid)
             (W_ix, W_ih, b_i, 0.5)]   # block 3: input   (sigmoid)

    wx = jnp.zeros((1, HP), jnp.float32)
    wh = jnp.zeros((HP, HP), jnp.float32)
    bb = jnp.zeros((1, HP), jnp.float32)
    gscale = jnp.zeros((1, HP), jnp.float32)
    goffset = jnp.zeros((1, HP), jnp.float32)

    for blk, (Wxg, Whg, bg, s) in enumerate(order):
        c0 = blk * Hb
        wx = wx.at[0, c0:c0 + H].set(s * Wxg[:, 0].astype(jnp.float32))
        wh = wh.at[:H, c0:c0 + H].set(s * Whg.T.astype(jnp.float32))
        bb = bb.at[0, c0:c0 + H].set(s * bg.astype(jnp.float32))
        if s == 1.0:     # tanh gate: identity post-affine
            gscale = gscale.at[0, c0:c0 + H].set(1.0)
        else:            # sigmoid gate: 0.5 * tanh(z/2) + 0.5
            gscale = gscale.at[0, c0:c0 + H].set(0.5)
            goffset = goffset.at[0, c0:c0 + H].set(0.5)

    wp = jnp.zeros((HP, Cp), jnp.float32).at[:H, :C].set(W_ph.T.astype(jnp.float32))
    bp = jnp.zeros((1, Cp), jnp.float32).at[0, :C].set(b_p.astype(jnp.float32))

    # Guard (review): padding-exactness invariants.  Padded hidden rows of the
    # recurrent / projection weights must be exactly zero so junk lanes of h/c
    # can never leak into the matmul results.
    assert not bool(jnp.any(wh[H:, :])), "padded Wh rows must be zero"
    assert not bool(jnp.any(wp[H:, :])), "padded Wp rows must be zero"

    # NOTE: wh / wp could be cast to bf16 here (halves the weight slab and
    # guarantees single-pass MXU on v6e/v7x); kept f32 for tight parity with
    # the f32 reference check below.
    packed = (wx, wh, bb, gscale, goffset, wp, bp)
    return jax.tree_util.tree_map(jax.block_until_ready, packed), C


@partial(jax.jit, static_argnames=("num_classes",))
def lstm_forward(x, packed, *, num_classes):
    """x: (batch, seq) float32; returns (batch, num_classes) float32."""
    wx, wh, bb, gs, go, wp, bp = packed
    B, S = x.shape
    HP = wh.shape[0]
    Cp = wp.shape[1]

    # Pad batch to a sublane multiple (unmasked full-tile ops) and tile it so a
    # large batch fills the MXU M dimension and shards across TensorCores.
    B8 = _round_up(B, 8)
    TB = min(256, B8)            # batch rows per grid step
    Bp = _round_up(B8, TB)
    xp = jnp.pad(x.astype(jnp.float32), ((0, Bp - B), (0, 0)))

    full2d = lambda shape: pl.BlockSpec(shape, lambda i: (0, 0))
    out_padded = pl.pallas_call(
        lstm_kernel,
        out_shape=jax.ShapeDtypeStruct((Bp, Cp), jnp.float32),
        grid=(Bp // TB,),
        in_specs=[
            pl.BlockSpec((TB, S), lambda i: (i, 0)),   # x tile
            full2d((1, HP)),                           # wx
            full2d((HP, HP)),                          # wh
            full2d((1, HP)),                           # b
            full2d((1, HP)),                           # gate_scale
            full2d((1, HP)),                           # gate_offset
            full2d((HP, Cp)),                          # wp
            full2d((1, Cp)),                           # bp
        ],
        out_specs=pl.BlockSpec((TB, Cp), lambda i: (i, 0)),
        compiler_params=pltpu.CompilerParams(
            dimension_semantics=("parallel",)),
    )(xp, wx, wh, bb, gs, go, wp, bp)
    # TODO(synk): on v5e, make Wh weight-stationary in the MXU via
    # pltpu.matmul_push_rhs / matmul_acc_lhs to drop the per-step RHS push.
    # TODO(synk): if many independent LSTM invocations exist, stack them along
    # another grid axis in one pallas_call to amortize launch overhead.
    return out_padded[:B, :num_classes]


def lstm_reference(x, params):
    """Pure-JAX reference mirroring the PyTorch forward."""
    (W_gx, W_gh, b_g, W_ix, W_ih, b_i,
     W_fx, W_fh, b_f, W_ox, W_oh, b_o, W_ph, b_p) = params
    B, S = x.shape
    H = W_gx.shape[0]
    c = jnp.zeros((B, H), jnp.float32)
    h = jnp.zeros((B, H), jnp.float32)
    p = None
    for t in range(S):
        x_t = x[:, t:t + 1]
        g = jnp.tanh(x_t @ W_gx.T + h @ W_gh.T + b_g)
        i = jax.nn.sigmoid(x_t @ W_ix.T + h @ W_ih.T + b_i)
        f = jax.nn.sigmoid(x_t @ W_fx.T + h @ W_fh.T + b_f)
        o = jax.nn.sigmoid(x_t @ W_ox.T + h @ W_oh.T + b_o)
        c = g * i + c * f
        h = jnp.tanh(c) * o
        p = jnp.einsum('ch,bh->bc', W_ph, h) + b_p
    return p


if __name__ == "__main__":
    seq_length = 8
    input_dim = 1          # forward slices x[:, t:t+1] -> (B, 1)
    num_hidden = 32
    num_classes = 10
    batch_size = 2

    key = jax.random.PRNGKey(0)
    keys = jax.random.split(key, 15)
    params = (
        jax.random.normal(keys[0], (num_hidden, input_dim), jnp.float32),    # W_gx
        jax.random.normal(keys[1], (num_hidden, num_hidden), jnp.float32),   # W_gh
        jax.random.normal(keys[2], (num_hidden,), jnp.float32),              # b_g
        jax.random.normal(keys[3], (num_hidden, input_dim), jnp.float32),    # W_ix
        jax.random.normal(keys[4], (num_hidden, num_hidden), jnp.float32),   # W_ih
        jax.random.normal(keys[5], (num_hidden,), jnp.float32),              # b_i
        jax.random.normal(keys[6], (num_hidden, input_dim), jnp.float32),    # W_fx
        jax.random.normal(keys[7], (num_hidden, num_hidden), jnp.float32),   # W_fh
        jax.random.normal(keys[8], (num_hidden,), jnp.float32),              # b_f
        jax.random.normal(keys[9], (num_hidden, input_dim), jnp.float32),    # W_ox
        jax.random.normal(keys[10], (num_hidden, num_hidden), jnp.float32),  # W_oh
        jax.random.normal(keys[11], (num_hidden,), jnp.float32),             # b_o
        jax.random.normal(keys[12], (num_classes, num_hidden), jnp.float32), # W_ph
        jax.random.normal(keys[13], (num_classes,), jnp.float32),            # b_p
    )
    x = jax.random.normal(keys[14], (batch_size, seq_length), jnp.float32)

    # One-time parameter packing (off the per-call hot path).
    packed, C = prepare_lstm_params(params)

    out = lstm_forward(x, packed, num_classes=C)
    out = jax.block_until_ready(out)

    ref = lstm_reference(x, params)
    assert out.shape == (batch_size, num_classes)
    assert jnp.allclose(out, ref, atol=5e-4, rtol=5e-4), (out, ref)

    print("KERNEL_OK")
</pallas_src>

<mosaic_0001>
module attributes {stable_mosaic.version = 11 : i64} {
  func.func @lstm_kernel(%arg0: i32, %arg1: memref<8x8xf32, #tpu.memory_space<vmem>>, %arg2: memref<1x128xf32, #tpu.memory_space<vmem>>, %arg3: memref<128x128xf32, #tpu.memory_space<vmem>>, %arg4: memref<1x128xf32, #tpu.memory_space<vmem>>, %arg5: memref<1x128xf32, #tpu.memory_space<vmem>>, %arg6: memref<1x128xf32, #tpu.memory_space<vmem>>, %arg7: memref<128x128xf32, #tpu.memory_space<vmem>>, %arg8: memref<1x128xf32, #tpu.memory_space<vmem>>, %arg9: memref<8x128xf32, #tpu.memory_space<vmem>>) attributes {dimension_semantics = [#tpu.dimension_semantics<parallel>], iteration_bounds = array<i64: 1>, scalar_prefetch = 0 : i64, scratch_operands = 0 : i64, tpu.core_type = #tpu.core_type<tc>, window_params = [{transform_indices = @transform_0, window_bounds = array<i64: 8, 8>}, {pipeline_mode = #tpu.pipeline_mode<synchronous>, transform_indices = @transform_1, window_bounds = array<i64: 1, 128>}, {pipeline_mode = #tpu.pipeline_mode<synchronous>, transform_indices = @transform_2, window_bounds = array<i64: 128, 128>}, {pipeline_mode = #tpu.pipeline_mode<synchronous>, transform_indices = @transform_3, window_bounds = array<i64: 1, 128>}, {pipeline_mode = #tpu.pipeline_mode<synchronous>, transform_indices = @transform_4, window_bounds = array<i64: 1, 128>}, {pipeline_mode = #tpu.pipeline_mode<synchronous>, transform_indices = @transform_5, window_bounds = array<i64: 1, 128>}, {pipeline_mode = #tpu.pipeline_mode<synchronous>, transform_indices = @transform_6, window_bounds = array<i64: 128, 128>}, {pipeline_mode = #tpu.pipeline_mode<synchronous>, transform_indices = @transform_7, window_bounds = array<i64: 1, 128>}, {transform_indices = @transform_8, window_bounds = array<i64: 8, 128>}]} {
    %c0 = arith.constant 0 : index
    %c0_0 = arith.constant 0 : index
    %0 = vector.load %arg1[%c0, %c0_0] : memref<8x8xf32, #tpu.memory_space<vmem>>, vector<8x8xf32>
    %c0_1 = arith.constant 0 : index
    %c0_2 = arith.constant 0 : index
    %1 = vector.load %arg2[%c0_1, %c0_2] : memref<1x128xf32, #tpu.memory_space<vmem>>, vector<1x128xf32>
    %c0_3 = arith.constant 0 : index
    %c0_4 = arith.constant 0 : index
    %2 = vector.load %arg4[%c0_3, %c0_4] : memref<1x128xf32, #tpu.memory_space<vmem>>, vector<1x128xf32>
    %c0_5 = arith.constant 0 : index
    %c0_6 = arith.constant 0 : index
    %3 = vector.load %arg5[%c0_5, %c0_6] : memref<1x128xf32, #tpu.memory_space<vmem>>, vector<1x128xf32>
    %c0_7 = arith.constant 0 : index
    %c0_8 = arith.constant 0 : index
    %4 = vector.load %arg6[%c0_7, %c0_8] : memref<1x128xf32, #tpu.memory_space<vmem>>, vector<1x128xf32>
    %cst = arith.constant 0.000000e+00 : f32
    %5 = vector.broadcast %cst : f32 to vector<8x128xf32>
    %cst_9 = arith.constant 0.000000e+00 : f32
    %6 = vector.broadcast %cst_9 : f32 to vector<8x128xf32>
    %7 = vector.extract_strided_slice %0 {offsets = [0, 0], sizes = [8, 1], strides = [1, 1]} : vector<8x8xf32> to vector<8x1xf32>
    %8 = vector.broadcast %7 : vector<8x1xf32> to vector<8x128xf32>
    %9 = vector.broadcast %1 : vector<1x128xf32> to vector<8x128xf32>
    %10 = arith.mulf %8, %9 : vector<8x128xf32>
    %11 = vector.broadcast %2 : vector<1x128xf32> to vector<8x128xf32>
    %12 = arith.addf %10, %11 : vector<8x128xf32>
    %c0_10 = arith.constant 0 : index
    %c0_11 = arith.constant 0 : index
    %13 = vector.load %arg3[%c0_10, %c0_11] : memref<128x128xf32, #tpu.memory_space<vmem>>, vector<128x128xf32>
    %cst_12 = arith.constant dense<0.000000e+00> : vector<8x128xf32>
    %14 = tpu.matmul %5, %13, %cst_12 {dimension_numbers = #tpu.dot_dimension_numbers<[1], [0], [0], [1], [0, 0, 1, 1], [], []>} : vector<8x128xf32>, vector<128x128xf32>, vector<8x128xf32> -> vector<8x128xf32>
    %15 = arith.addf %12, %14 : vector<8x128xf32>
    %16 = math.tanh %15 : vector<8x128xf32>
    %17 = vector.broadcast %3 : vector<1x128xf32> to vector<8x128xf32>
    %18 = arith.mulf %16, %17 : vector<8x128xf32>
    %19 = vector.broadcast %4 : vector<1x128xf32> to vector<8x128xf32>
    %20 = arith.addf %18, %19 : vector<8x128xf32>
    %c64_i32 = arith.constant 64 : i32
    %21 = tpu.dynamic_rotate %20 by %c64_i32 dim 1 : vector<8x128xf32>, i32 -> vector<8x128xf32>
    %c32_i32 = arith.constant 32 : i32
    %22 = tpu.dynamic_rotate %20 by %c32_i32 dim 1 : vector<8x128xf32>, i32 -> vector<8x128xf32>
    %c96_i32 = arith.constant 96 : i32
    %23 = tpu.dynamic_rotate %20 by %c96_i32 dim 1 : vector<8x128xf32>, i32 -> vector<8x128xf32>
    %24 = arith.mulf %22, %23 : vector<8x128xf32>
    %25 = arith.mulf %6, %20 : vector<8x128xf32>
    %26 = arith.addf %24, %25 : vector<8x128xf32>
    %27 = math.tanh %26 : vector<8x128xf32>
    %28 = arith.mulf %27, %21 : vector<8x128xf32>
    %29 = vector.extract_strided_slice %0 {offsets = [0, 1], sizes = [8, 1], strides = [1, 1]} : vector<8x8xf32> to vector<8x1xf32>
    %30 = vector.broadcast %29 : vector<8x1xf32> to vector<8x128xf32>
    %31 = vector.broadcast %1 : vector<1x128xf32> to vector<8x128xf32>
    %32 = arith.mulf %30, %31 : vector<8x128xf32>
    %33 = vector.broadcast %2 : vector<1x128xf32> to vector<8x128xf32>
    %34 = arith.addf %32, %33 : vector<8x128xf32>
    %c0_13 = arith.constant 0 : index
    %c0_14 = arith.constant 0 : index
    %35 = vector.load %arg3[%c0_13, %c0_14] : memref<128x128xf32, #tpu.memory_space<vmem>>, vector<128x128xf32>
    %cst_15 = arith.constant dense<0.000000e+00> : vector<8x128xf32>
    %36 = tpu.matmul %28, %35, %cst_15 {dimension_numbers = #tpu.dot_dimension_numbers<[1], [0], [0], [1], [0, 0, 1, 1], [], []>} : vector<8x128xf32>, vector<128x128xf32>, vector<8x128xf32> -> vector<8x128xf32>
    %37 = arith.addf %34, %36 : vector<8x128xf32>
    %38 = math.tanh %37 : vector<8x128xf32>
    %39 = vector.broadcast %3 : vector<1x128xf32> to vector<8x128xf32>
    %40 = arith.mulf %38, %39 : vector<8x128xf32>
    %41 = vector.broadcast %4 : vector<1x128xf32> to vector<8x128xf32>
    %42 = arith.addf %40, %41 : vector<8x128xf32>
    %c64_i32_16 = arith.constant 64 : i32
    %43 = tpu.dynamic_rotate %42 by %c64_i32_16 dim 1 : vector<8x128xf32>, i32 -> vector<8x128xf32>
    %c32_i32_17 = arith.constant 32 : i32
    %44 = tpu.dynamic_rotate %42 by %c32_i32_17 dim 1 : vector<8x128xf32>, i32 -> vector<8x128xf32>
    %c96_i32_18 = arith.constant 96 : i32
    %45 = tpu.dynamic_rotate %42 by %c96_i32_18 dim 1 : vector<8x128xf32>, i32 -> vector<8x128xf32>
    %46 = arith.mulf %44, %45 : vector<8x128xf32>
    %47 = arith.mulf %26, %42 : vector<8x128xf32>
    %48 = arith.addf %46, %47 : vector<8x128xf32>
    %49 = math.tanh %48 : vector<8x128xf32>
    %50 = arith.mulf %49, %43 : vector<8x128xf32>
    %51 = vector.extract_strided_slice %0 {offsets = [0, 2], sizes = [8, 1], strides = [1, 1]} : vector<8x8xf32> to vector<8x1xf32>
    %52 = vector.broadcast %51 : vector<8x1xf32> to vector<8x128xf32>
    %53 = vector.broadcast %1 : vector<1x128xf32> to vector<8x128xf32>
    %54 = arith.mulf %52, %53 : vector<8x128xf32>
    %55 = vector.broadcast %2 : vector<1x128xf32> to vector<8x128xf32>
    %56 = arith.addf %54, %55 : vector<8x128xf32>
    %c0_19 = arith.constant 0 : index
    %c0_20 = arith.constant 0 : index
    %57 = vector.load %arg3[%c0_19, %c0_20] : memref<128x128xf32, #tpu.memory_space<vmem>>, vector<128x128xf32>
    %cst_21 = arith.constant dense<0.000000e+00> : vector<8x128xf32>
    %58 = tpu.matmul %50, %57, %cst_21 {dimension_numbers = #tpu.dot_dimension_numbers<[1], [0], [0], [1], [0, 0, 1, 1], [], []>} : vector<8x128xf32>, vector<128x128xf32>, vector<8x128xf32> -> vector<8x128xf32>
    %59 = arith.addf %56, %58 : vector<8x128xf32>
    %60 = math.tanh %59 : vector<8x128xf32>
    %61 = vector.broadcast %3 : vector<1x128xf32> to vector<8x128xf32>
    %62 = arith.mulf %60, %61 : vector<8x128xf32>
    %63 = vector.broadcast %4 : vector<1x128xf32> to vector<8x128xf32>
    %64 = arith.addf %62, %63 : vector<8x128xf32>
    %c64_i32_22 = arith.constant 64 : i32
    %65 = tpu.dynamic_rotate %64 by %c64_i32_22 dim 1 : vector<8x128xf32>, i32 -> vector<8x128xf32>
    %c32_i32_23 = arith.constant 32 : i32
    %66 = tpu.dynamic_rotate %64 by %c32_i32_23 dim 1 : vector<8x128xf32>, i32 -> vector<8x128xf32>
    %c96_i32_24 = arith.constant 96 : i32
    %67 = tpu.dynamic_rotate %64 by %c96_i32_24 dim 1 : vector<8x128xf32>, i32 -> vector<8x128xf32>
    %68 = arith.mulf %66, %67 : vector<8x128xf32>
    %69 = arith.mulf %48, %64 : vector<8x128xf32>
    %70 = arith.addf %68, %69 : vector<8x128xf32>
    %71 = math.tanh %70 : vector<8x128xf32>
    %72 = arith.mulf %71, %65 : vector<8x128xf32>
    %73 = vector.extract_strided_slice %0 {offsets = [0, 3], sizes = [8, 1], strides = [1, 1]} : vector<8x8xf32> to vector<8x1xf32>
    %74 = vector.broadcast %73 : vector<8x1xf32> to vector<8x128xf32>
    %75 = vector.broadcast %1 : vector<1x128xf32> to vector<8x128xf32>
    %76 = arith.mulf %74, %75 : vector<8x128xf32>
    %77 = vector.broadcast %2 : vector<1x128xf32> to vector<8x128xf32>
    %78 = arith.addf %76, %77 : vector<8x128xf32>
    %c0_25 = arith.constant 0 : index
    %c0_26 = arith.constant 0 : index
    %79 = vector.load %arg3[%c0_25, %c0_26] : memref<128x128xf32, #tpu.memory_space<vmem>>, vector<128x128xf32>
    %cst_27 = arith.constant dense<0.000000e+00> : vector<8x128xf32>
    %80 = tpu.matmul %72, %79, %cst_27 {dimension_numbers = #tpu.dot_dimension_numbers<[1], [0], [0], [1], [0, 0, 1, 1], [], []>} : vector<8x128xf32>, vector<128x128xf32>, vector<8x128xf32> -> vector<8x128xf32>
    %81 = arith.addf %78, %80 : vector<8x128xf32>
    %82 = math.tanh %81 : vector<8x128xf32>
    %83 = vector.broadcast %3 : vector<1x128xf32> to vector<8x128xf32>
    %84 = arith.mulf %82, %83 : vector<8x128xf32>
    %85 = vector.broadcast %4 : vector<1x128xf32> to vector<8x128xf32>
    %86 = arith.addf %84, %85 : vector<8x128xf32>
    %c64_i32_28 = arith.constant 64 : i32
    %87 = tpu.dynamic_rotate %86 by %c64_i32_28 dim 1 : vector<8x128xf32>, i32 -> vector<8x128xf32>
    %c32_i32_29 = arith.constant 32 : i32
    %88 = tpu.dynamic_rotate %86 by %c32_i32_29 dim 1 : vector<8x128xf32>, i32 -> vector<8x128xf32>
    %c96_i32_30 = arith.constant 96 : i32
    %89 = tpu.dynamic_rotate %86 by %c96_i32_30 dim 1 : vector<8x128xf32>, i32 -> vector<8x128xf32>
    %90 = arith.mulf %88, %89 : vector<8x128xf32>
    %91 = arith.mulf %70, %86 : vector<8x128xf32>
    %92 = arith.addf %90, %91 : vector<8x128xf32>
    %93 = math.tanh %92 : vector<8x128xf32>
    %94 = arith.mulf %93, %87 : vector<8x128xf32>
    %95 = vector.extract_strided_slice %0 {offsets = [0, 4], sizes = [8, 1], strides = [1, 1]} : vector<8x8xf32> to vector<8x1xf32>
    %96 = vector.broadcast %95 : vector<8x1xf32> to vector<8x128xf32>
    %97 = vector.broadcast %1 : vector<1x128xf32> to vector<8x128xf32>
    %98 = arith.mulf %96, %97 : vector<8x128xf32>
    %99 = vector.broadcast %2 : vector<1x128xf32> to vector<8x128xf32>
    %100 = arith.addf %98, %99 : vector<8x128xf32>
    %c0_31 = arith.constant 0 : index
    %c0_32 = arith.constant 0 : index
    %101 = vector.load %arg3[%c0_31, %c0_32] : memref<128x128xf32, #tpu.memory_space<vmem>>, vector<128x128xf32>
    %cst_33 = arith.constant dense<0.000000e+00> : vector<8x128xf32>
    %102 = tpu.matmul %94, %101, %cst_33 {dimension_numbers = #tpu.dot_dimension_numbers<[1], [0], [0], [1], [0, 0, 1, 1], [], []>} : vector<8x128xf32>, vector<128x128xf32>, vector<8x128xf32> -> vector<8x128xf32>
    %103 = arith.addf %100, %102 : vector<8x128xf32>
    %104 = math.tanh %103 : vector<8x128xf32>
    %105 = vector.broadcast %3 : vector<1x128xf32> to vector<8x128xf32>
    %106 = arith.mulf %104, %105 : vector<8x128xf32>
    %107 = vector.broadcast %4 : vector<1x128xf32> to vector<8x128xf32>
    %108 = arith.addf %106, %107 : vector<8x128xf32>
    %c64_i32_34 = arith.constant 64 : i32
    %109 = tpu.dynamic_rotate %108 by %c64_i32_34 dim 1 : vector<8x128xf32>, i32 -> vector<8x128xf32>
    %c32_i32_35 = arith.constant 32 : i32
    %110 = tpu.dynamic_rotate %108 by %c32_i32_35 dim 1 : vector<8x128xf32>, i32 -> vector<8x128xf32>
    %c96_i32_36 = arith.constant 96 : i32
    %111 = tpu.dynamic_rotate %108 by %c96_i32_36 dim 1 : vector<8x128xf32>, i32 -> vector<8x128xf32>
    %112 = arith.mulf %110, %111 : vector<8x128xf32>
    %113 = arith.mulf %92, %108 : vector<8x128xf32>
    %114 = arith.addf %112, %113 : vector<8x128xf32>
    %115 = math.tanh %114 : vector<8x128xf32>
    %116 = arith.mulf %115, %109 : vector<8x128xf32>
    %117 = vector.extract_strided_slice %0 {offsets = [0, 5], sizes = [8, 1], strides = [1, 1]} : vector<8x8xf32> to vector<8x1xf32>
    %118 = vector.broadcast %117 : vector<8x1xf32> to vector<8x128xf32>
    %119 = vector.broadcast %1 : vector<1x128xf32> to vector<8x128xf32>
    %120 = arith.mulf %118, %119 : vector<8x128xf32>
    %121 = vector.broadcast %2 : vector<1x128xf32> to vector<8x128xf32>
    %122 = arith.addf %120, %121 : vector<8x128xf32>
    %c0_37 = arith.constant 0 : index
    %c0_38 = arith.constant 0 : index
    %123 = vector.load %arg3[%c0_37, %c0_38] : memref<128x128xf32, #tpu.memory_space<vmem>>, vector<128x128xf32>
    %cst_39 = arith.constant dense<0.000000e+00> : vector<8x128xf32>
    %124 = tpu.matmul %116, %123, %cst_39 {dimension_numbers = #tpu.dot_dimension_numbers<[1], [0], [0], [1], [0, 0, 1, 1], [], []>} : vector<8x128xf32>, vector<128x128xf32>, vector<8x128xf32> -> vector<8x128xf32>
    %125 = arith.addf %122, %124 : vector<8x128xf32>
    %126 = math.tanh %125 : vector<8x128xf32>
    %127 = vector.broadcast %3 : vector<1x128xf32> to vector<8x128xf32>
    %128 = arith.mulf %126, %127 : vector<8x128xf32>
    %129 = vector.broadcast %4 : vector<1x128xf32> to vector<8x128xf32>
    %130 = arith.addf %128, %129 : vector<8x128xf32>
    %c64_i32_40 = arith.constant 64 : i32
    %131 = tpu.dynamic_rotate %130 by %c64_i32_40 dim 1 : vector<8x128xf32>, i32 -> vector<8x128xf32>
    %c32_i32_41 = arith.constant 32 : i32
    %132 = tpu.dynamic_rotate %130 by %c32_i32_41 dim 1 : vector<8x128xf32>, i32 -> vector<8x128xf32>
    %c96_i32_42 = arith.constant 96 : i32
    %133 = tpu.dynamic_rotate %130 by %c96_i32_42 dim 1 : vector<8x128xf32>, i32 -> vector<8x128xf32>
    %134 = arith.mulf %132, %133 : vector<8x128xf32>
    %135 = arith.mulf %114, %130 : vector<8x128xf32>
    %136 = arith.addf %134, %135 : vector<8x128xf32>
    %137 = math.tanh %136 : vector<8x128xf32>
    %138 = arith.mulf %137, %131 : vector<8x128xf32>
    %139 = vector.extract_strided_slice %0 {offsets = [0, 6], sizes = [8, 1], strides = [1, 1]} : vector<8x8xf32> to vector<8x1xf32>
    %140 = vector.broadcast %139 : vector<8x1xf32> to vector<8x128xf32>
    %141 = vector.broadcast %1 : vector<1x128xf32> to vector<8x128xf32>
    %142 = arith.mulf %140, %141 : vector<8x128xf32>
    %143 = vector.broadcast %2 : vector<1x128xf32> to vector<8x128xf32>
    %144 = arith.addf %142, %143 : vector<8x128xf32>
    %c0_43 = arith.constant 0 : index
    %c0_44 = arith.constant 0 : index
    %145 = vector.load %arg3[%c0_43, %c0_44] : memref<128x128xf32, #tpu.memory_space<vmem>>, vector<128x128xf32>
    %cst_45 = arith.constant dense<0.000000e+00> : vector<8x128xf32>
    %146 = tpu.matmul %138, %145, %cst_45 {dimension_numbers = #tpu.dot_dimension_numbers<[1], [0], [0], [1], [0, 0, 1, 1], [], []>} : vector<8x128xf32>, vector<128x128xf32>, vector<8x128xf32> -> vector<8x128xf32>
    %147 = arith.addf %144, %146 : vector<8x128xf32>
    %148 = math.tanh %147 : vector<8x128xf32>
    %149 = vector.broadcast %3 : vector<1x128xf32> to vector<8x128xf32>
    %150 = arith.mulf %148, %149 : vector<8x128xf32>
    %151 = vector.broadcast %4 : vector<1x128xf32> to vector<8x128xf32>
    %152 = arith.addf %150, %151 : vector<8x128xf32>
    %c64_i32_46 = arith.constant 64 : i32
    %153 = tpu.dynamic_rotate %152 by %c64_i32_46 dim 1 : vector<8x128xf32>, i32 -> vector<8x128xf32>
    %c32_i32_47 = arith.constant 32 : i32
    %154 = tpu.dynamic_rotate %152 by %c32_i32_47 dim 1 : vector<8x128xf32>, i32 -> vector<8x128xf32>
    %c96_i32_48 = arith.constant 96 : i32
    %155 = tpu.dynamic_rotate %152 by %c96_i32_48 dim 1 : vector<8x128xf32>, i32 -> vector<8x128xf32>
    %156 = arith.mulf %154, %155 : vector<8x128xf32>
    %157 = arith.mulf %136, %152 : vector<8x128xf32>
    %158 = arith.addf %156, %157 : vector<8x128xf32>
    %159 = math.tanh %158 : vector<8x128xf32>
    %160 = arith.mulf %159, %153 : vector<8x128xf32>
    %161 = vector.extract_strided_slice %0 {offsets = [0, 7], sizes = [8, 1], strides = [1, 1]} : vector<8x8xf32> to vector<8x1xf32>
    %162 = vector.broadcast %161 : vector<8x1xf32> to vector<8x128xf32>
    %163 = vector.broadcast %1 : vector<1x128xf32> to vector<8x128xf32>
    %164 = arith.mulf %162, %163 : vector<8x128xf32>
    %165 = vector.broadcast %2 : vector<1x128xf32> to vector<8x128xf32>
    %166 = arith.addf %164, %165 : vector<8x128xf32>
    %c0_49 = arith.constant 0 : index
    %c0_50 = arith.constant 0 : index
    %167 = vector.load %arg3[%c0_49, %c0_50] : memref<128x128xf32, #tpu.memory_space<vmem>>, vector<128x128xf32>
    %cst_51 = arith.constant dense<0.000000e+00> : vector<8x128xf32>
    %168 = tpu.matmul %160, %167, %cst_51 {dimension_numbers = #tpu.dot_dimension_numbers<[1], [0], [0], [1], [0, 0, 1, 1], [], []>} : vector<8x128xf32>, vector<128x128xf32>, vector<8x128xf32> -> vector<8x128xf32>
    %169 = arith.addf %166, %168 : vector<8x128xf32>
    %170 = math.tanh %169 : vector<8x128xf32>
    %171 = vector.broadcast %3 : vector<1x128xf32> to vector<8x128xf32>
    %172 = arith.mulf %170, %171 : vector<8x128xf32>
    %173 = vector.broadcast %4 : vector<1x128xf32> to vector<8x128xf32>
    %174 = arith.addf %172, %173 : vector<8x128xf32>
    %c64_i32_52 = arith.constant 64 : i32
    %175 = tpu.dynamic_rotate %174 by %c64_i32_52 dim 1 : vector<8x128xf32>, i32 -> vector<8x128xf32>
    %c32_i32_53 = arith.constant 32 : i32
    %176 = tpu.dynamic_rotate %174 by %c32_i32_53 dim 1 : vector<8x128xf32>, i32 -> vector<8x128xf32>
    %c96_i32_54 = arith.constant 96 : i32
    %177 = tpu.dynamic_rotate %174 by %c96_i32_54 dim 1 : vector<8x128xf32>, i32 -> vector<8x128xf32>
    %178 = arith.mulf %176, %177 : vector<8x128xf32>
    %179 = arith.mulf %158, %174 : vector<8x128xf32>
    %180 = arith.addf %178, %179 : vector<8x128xf32>
    %181 = math.tanh %180 : vector<8x128xf32>
    %182 = arith.mulf %181, %175 : vector<8x128xf32>
    %c0_55 = arith.constant 0 : index
    %c0_56 = arith.constant 0 : index
    %183 = vector.load %arg7[%c0_55, %c0_56] : memref<128x128xf32, #tpu.memory_space<vmem>>, vector<128x128xf32>
    %cst_57 = arith.constant dense<0.000000e+00> : vector<8x128xf32>
    %184 = tpu.matmul %182, %183, %cst_57 {dimension_numbers = #tpu.dot_dimension_numbers<[1], [0], [0], [1], [0, 0, 1, 1], [], []>} : vector<8x128xf32>, vector<128x128xf32>, vector<8x128xf32> -> vector<8x128xf32>
    %c0_58 = arith.constant 0 : index
    %c0_59 = arith.constant 0 : index
    %185 = vector.load %arg8[%c0_58, %c0_59] : memref<1x128xf32, #tpu.memory_space<vmem>>, vector<1x128xf32>
    %186 = vector.broadcast %185 : vector<1x128xf32> to vector<8x128xf32>
    %187 = arith.addf %184, %186 : vector<8x128xf32>
    %c0_60 = arith.constant 0 : index
    %c0_61 = arith.constant 0 : index
    %188 = vector.load %arg9[%c0_60, %c0_61] : memref<8x128xf32, #tpu.memory_space<vmem>>, vector<8x128xf32>
    tpu.vector_store %arg9[%c0_60, %c0_61], %187 {strides = array<i32>} : memref<8x128xf32, #tpu.memory_space<vmem>>, vector<8x128xf32>,
    return
  }
  func.func @transform_0(%arg0: i32) -> (i32, i32) {
    %c0_i32 = arith.constant 0 : i32
    %c0_i32_0 = arith.constant 0 : i32
    return %arg0, %c0_i32 : i32, i32
  }
  func.func @transform_1(%arg0: i32) -> (i32, i32) {
    %c0_i32 = arith.constant 0 : i32
    %c0_i32_0 = arith.constant 0 : i32
    %c0_i32_1 = arith.constant 0 : i32
    return %c0_i32, %c0_i32_0 : i32, i32
  }
  func.func @transform_2(%arg0: i32) -> (i32, i32) {
    %c0_i32 = arith.constant 0 : i32
    %c0_i32_0 = arith.constant 0 : i32
    %c0_i32_1 = arith.constant 0 : i32
    return %c0_i32, %c0_i32_0 : i32, i32
  }
  func.func @transform_3(%arg0: i32) -> (i32, i32) {
    %c0_i32 = arith.constant 0 : i32
    %c0_i32_0 = arith.constant 0 : i32
    %c0_i32_1 = arith.constant 0 : i32
    return %c0_i32, %c0_i32_0 : i32, i32
  }
  func.func @transform_4(%arg0: i32) -> (i32, i32) {
    %c0_i32 = arith.constant 0 : i32
    %c0_i32_0 = arith.constant 0 : i32
    %c0_i32_1 = arith.constant 0 : i32
    return %c0_i32, %c0_i32_0 : i32, i32
  }
  func.func @transform_5(%arg0: i32) -> (i32, i32) {
    %c0_i32 = arith.constant 0 : i32
    %c0_i32_0 = arith.constant 0 : i32
    %c0_i32_1 = arith.constant 0 : i32
    return %c0_i32, %c0_i32_0 : i32, i32
  }
  func.func @transform_6(%arg0: i32) -> (i32, i32) {
    %c0_i32 = arith.constant 0 : i32
    %c0_i32_0 = arith.constant 0 : i32
    %c0_i32_1 = arith.constant 0 : i32
    return %c0_i32, %c0_i32_0 : i32, i32
  }
  func.func @transform_7(%arg0: i32) -> (i32, i32) {
    %c0_i32 = arith.constant 0 : i32
    %c0_i32_0 = arith.constant 0 : i32
    %c0_i32_1 = arith.constant 0 : i32
    return %c0_i32, %c0_i32_0 : i32, i32
  }
  func.func @transform_8(%arg0: i32) -> (i32, i32) {
    %c0_i32 = arith.constant 0 : i32
    %c0_i32_0 = arith.constant 0 : i32
    return %arg0, %c0_i32 : i32, i32
  }
}

</mosaic_0001>

<llo_original>
// kernel: lstm_forward.1
$region0: #{lstm_forward.1}
  #allocation0 [shape = 'u32[]', space=smem, size = 0x4, offset = 0x4, fixed_abs, tag = 'smem constant byte address 0x4 - core index']
  #allocation1 [shape = 'u32[144,128]{1,0:T(1,128)}', space=vmem, size = 0x12000, scoped, tag = 'internal scratch']
  %s0 = inlined_call_operand.vmem [shape: f32[8,8], index: 0, kind: input, shape index: {}]
  %s1 = inlined_call_operand.vmem [shape: f32[1,128], index: 1, kind: input, shape index: {}]
  %s2 = inlined_call_operand.hbm [shape: f32[128,128], index: 2, kind: input, shape index: {}]
  %s3 = inlined_call_operand.vmem [shape: f32[1,128], index: 3, kind: input, shape index: {}]
  %s4 = inlined_call_operand.vmem [shape: f32[1,128], index: 4, kind: input, shape index: {}]
  %s5 = inlined_call_operand.vmem [shape: f32[1,128], index: 5, kind: input, shape index: {}]
  %s6 = inlined_call_operand.hbm [shape: f32[128,128], index: 6, kind: input, shape index: {}]
  %s7 = inlined_call_operand.vmem [shape: f32[1,128], index: 7, kind: input, shape index: {}]
  %s8 = inlined_call_operand.vmem [shape: f32[8,128], index: 8, kind: output, shape index: {}]
  %s9 = sld [smem:[#allocation0]]
  $region50: #{lstm_forward.1} parent=0
    _
  %s11 = ssub.s32 1, %s9
  %s12 = scalar_select 0, %s11, %s9
  $region1: #{lstm_forward.1} parent=0
    #allocation2 [shape = 'u8[65536]{0}', space=vmem, size = 0x10000, scoped, tag = 'input window, operand 2, single buffered']
    #allocation3 [shape = 's32[1]{0}', space=sflag, size = 0x4, scoped, tag = 'scoped memory for lstm_forward.1']
    #allocation4 [shape = 'u8[65536]{0}', space=vmem, size = 0x10000, scoped, tag = 'input window, operand 6, single buffered']
    #allocation5 [shape = 's32[1]{0}', space=sflag, size = 0x4, scoped, tag = 'scoped memory for lstm_forward.1']
    %13 = vsyncpa [#allocation3], 0
    %14 = vsyncpa [#allocation5], 0
    // Predicated region
    $region2: #{lstm_forward.1} parent=1 // pred_check
      _
    $region3: #{lstm_forward.1} parent=1 // pred_check_branch
      %16 = sbr.rel (0) target = $region5
    $region4: #{lstm_forward.1} parent=1 // pred_region
      _
    $region5: #{lstm_forward.1} parent=1 // pred_fallthru
      _
    // Predicated region
    $region6: #{lstm_forward.1} parent=1 // pred_check
      _
    $region7: #{lstm_forward.1} parent=1 // pred_check_branch
      %18 = sbr.rel (0) target = $region9
    $region8: #{lstm_forward.1} parent=1 // pred_region
      _
    $region9: #{lstm_forward.1} parent=1 // pred_fallthru
      _
    // Predicated region
    $region10: #{lstm_forward.1} parent=1 // pred_check
      _
    $region11: #{lstm_forward.1} parent=1 // pred_check_branch
      %20 = sbr.rel (0) target = $region13
    $region12: #{lstm_forward.1} parent=1 // pred_region
      %s22 = ssub.s32 2048, 2048
      %23 = vsyncadd [#allocation3], %s22
      %s24 = sshll.u32 [#allocation2], 4
      %s25 = int_to_ptr.vmem [resolvable:$true] %s24
      %30 = dma.hbm_to_vmem [thread:$0]  %s2, 2048, %s25, [#allocation3], 128, 128, 8
    $region13: #{lstm_forward.1} parent=1 // pred_fallthru
      _
    // Predicated region
    $region14: #{lstm_forward.1} parent=1 // pred_check
      _
    $region15: #{lstm_forward.1} parent=1 // pred_check_branch
      %32 = sbr.rel (0) target = $region17
    $region16: #{lstm_forward.1} parent=1 // pred_region
      _
    $region17: #{lstm_forward.1} parent=1 // pred_fallthru
      _
    // Predicated region
    $region18: #{lstm_forward.1} parent=1 // pred_check
      _
    $region19: #{lstm_forward.1} parent=1 // pred_check_branch
      %34 = sbr.rel (0) target = $region21
    $region20: #{lstm_forward.1} parent=1 // pred_region
      _
    $region21: #{lstm_forward.1} parent=1 // pred_fallthru
      _
    // Predicated region
    $region22: #{lstm_forward.1} parent=1 // pred_check
      _
    $region23: #{lstm_forward.1} parent=1 // pred_check_branch
      %36 = sbr.rel (0) target = $region25
    $region24: #{lstm_forward.1} parent=1 // pred_region
      _
    $region25: #{lstm_forward.1} parent=1 // pred_fallthru
      _
    // Predicated region
    $region26: #{lstm_forward.1} parent=1 // pred_check
      _
    $region27: #{lstm_forward.1} parent=1 // pred_check_branch
      %38 = sbr.rel (0) target = $region29
    $region28: #{lstm_forward.1} parent=1 // pred_region
      %s40 = ssub.s32 2048, 2048
      %41 = vsyncadd [#allocation5], %s40
      %s42 = sshll.u32 [#allocation4], 4
      %s43 = int_to_ptr.vmem [resolvable:$true] %s42
      %48 = dma.hbm_to_vmem [thread:$0]  %s6, 2048, %s43, [#allocation5], 128, 128, 8
    $region29: #{lstm_forward.1} parent=1 // pred_fallthru
      _
    // Predicated region
    $region30: #{lstm_forward.1} parent=1 // pred_check
      _
    $region31: #{lstm_forward.1} parent=1 // pred_check_branch
      %50 = sbr.rel (0) target = $region33
    $region32: #{lstm_forward.1} parent=1 // pred_region
      _
    $region33: #{lstm_forward.1} parent=1 // pred_fallthru
      _
    // Predicated region
    $region34: #{lstm_forward.1} parent=1 // pred_check
      _
    $region35: #{lstm_forward.1} parent=1 // pred_check_branch
      %52 = sbr.rel (0) target = $region37
    $region36: #{lstm_forward.1} parent=1 // pred_region
      %53 = dma.done [#allocation3], 2048
    $region37: #{lstm_forward.1} parent=1 // pred_fallthru
      _
    // Predicated region
    $region38: #{lstm_forward.1} parent=1 // pred_check
      _
    $region39: #{lstm_forward.1} parent=1 // pred_check_branch
      %55 = sbr.rel (0) target = $region41
    $region40: #{lstm_forward.1} parent=1 // pred_region
      %56 = dma.done [#allocation5], 2048
    $region41: #{lstm_forward.1} parent=1 // pred_fallthru
      _
    %v57 = vld [vmem:[%s0] sm:$0xff]
    %v58 = vld [vmem:[%s1] sm:$0x1]
    %v59 = vld [vmem:[%s3] sm:$0x1]
    %v60 = vld [vmem:[%s4] sm:$0x1]
    %v61 = vld [vmem:[%s5] sm:$0x1]
    %63 = vset.pattern.permute.xlu0 0
    %64 = vperm.xlu0 %63, %v57
    %v65 = vpop.permute.xlu0 %64
    %v68 = vlaneseq
    %v69 = vshrl.u32 %v68, 7
    %v70 = vsub.s32 0, %v69
    %v71 = vrot.slane %v58, %v70
    %v73 = vmul.f32 %v65, %v71
    %v75 = vlaneseq
    %v76 = vshrl.u32 %v75, 7
    %v77 = vsub.s32 0, %v76
    %v78 = vrot.slane %v59, %v77
    %v80 = vadd.f32 %v73, %v78
    %v81 = vld [vmem:[#allocation2] sm:$0xff]
    %v82 = vld [vmem:[#allocation2 + $0x8] sm:$0xff]
    %v83 = vld [vmem:[#allocation2 + $0x10] sm:$0xff]
    %v84 = vld [vmem:[#allocation2 + $0x18] sm:$0xff]
    %v85 = vld [vmem:[#allocation2 + $0x20] sm:$0xff]
    %v86 = vld [vmem:[#allocation2 + $0x28] sm:$0xff]
    %v87 = vld [vmem:[#allocation2 + $0x30] sm:$0xff]
    %v88 = vld [vmem:[#allocation2 + $0x38] sm:$0xff]
    %v89 = vld [vmem:[#allocation2 + $0x40] sm:$0xff]
    %v90 = vld [vmem:[#allocation2 + $0x48] sm:$0xff]
    %v91 = vld [vmem:[#allocation2 + $0x50] sm:$0xff]
    %v92 = vld [vmem:[#allocation2 + $0x58] sm:$0xff]
    %v93 = vld [vmem:[#allocation2 + $0x60] sm:$0xff]
    %v94 = vld [vmem:[#allocation2 + $0x68] sm:$0xff]
    %v95 = vld [vmem:[#allocation2 + $0x70] sm:$0xff]
    %v96 = vld [vmem:[#allocation2 + $0x78] sm:$0xff]
    %97 = vmatprep.subr.mxu0 0.0
    %98 = vmatpush1.msra.mxu0 %v96
    %99 = vmatprep.subr.mxu0 0.0
    %100 = vmatpush1.msra.mxu0 %v95
    %101 = vmatprep.subr.mxu0 0.0
    %102 = vmatpush1.msra.mxu0 %v94
    %103 = vmatprep.subr.mxu0 0.0
    %104 = vmatpush1.msra.mxu0 %v93
    %105 = vmatprep.subr.mxu0 0.0
    %106 = vmatpush1.msra.mxu0 %v92
    %107 = vmatprep.subr.mxu0 0.0
    %108 = vmatpush1.msra.mxu0 %v91
    %109 = vmatprep.subr.mxu0 0.0
    %110 = vmatpush1.msra.mxu0 %v90
    %111 = vmatprep.subr.mxu0 0.0
    %112 = vmatpush1.msra.mxu0 %v89
    %113 = vmatprep.subr.mxu0 0.0
    %114 = vmatpush1.msra.mxu0 %v88
    %115 = vmatprep.subr.mxu0 0.0
    %116 = vmatpush1.msra.mxu0 %v87
    %117 = vmatprep.subr.mxu0 0.0
    %118 = vmatpush1.msra.mxu0 %v86
    %119 = vmatprep.subr.mxu0 0.0
    %120 = vmatpush1.msra.mxu0 %v85
    %121 = vmatprep.subr.mxu0 0.0
    %122 = vmatpush1.msra.mxu0 %v84
    %123 = vmatprep.subr.mxu0 0.0
    %124 = vmatpush1.msra.mxu0 %v83
    %125 = vmatprep.subr.mxu0 0.0
    %126 = vmatpush1.msra.mxu0 %v82
    %127 = vmatprep.subr.mxu0 0.0
    %128 = vmatpush1.msra.mxu0 %v81
    %129 = vmatprep.subr.mxu0 0.0
    %130 = vmatpush2.msra.mxu0 0.0
    %131 = vmatprep.subr.mxu0 0.0
    %132 = vmatpush2.msra.mxu0 0.0
    %133 = vmatprep.subr.mxu0 0.0
    %134 = vmatpush2.msra.mxu0 0.0
    %135 = vmatprep.subr.mxu0 0.0
    %136 = vmatpush2.msra.mxu0 0.0
    %137 = vmatprep.subr.mxu0 0.0
    %138 = vmatpush2.msra.mxu0 0.0
    %139 = vmatprep.subr.mxu0 0.0
    %140 = vmatpush2.msra.mxu0 0.0
    %141 = vmatprep.subr.mxu0 0.0
    %142 = vmatpush2.msra.mxu0 0.0
    %143 = vmatprep.subr.mxu0 0.0
    %144 = vmatpush2.msra.mxu0 0.0
    %145 = vmatprep.subr.mxu0 0.0
    %146 = vmatpush2.msra.mxu0 0.0
    %147 = vmatprep.subr.mxu0 0.0
    %148 = vmatpush2.msra.mxu0 0.0
    %149 = vmatprep.subr.mxu0 0.0
    %150 = vmatpush2.msra.mxu0 0.0
    %151 = vmatprep.subr.mxu0 0.0
    %152 = vmatpush2.msra.mxu0 0.0
    %153 = vmatprep.subr.mxu0 0.0
    %154 = vmatpush2.msra.mxu0 0.0
    %155 = vmatprep.subr.mxu0 0.0
    %156 = vmatpush2.msra.mxu0 0.0
    %157 = vmatprep.subr.mxu0 0.0
    %158 = vmatpush2.msra.mxu0 0.0
    %159 = vmatprep.subr.mxu0 0.0
    %160 = vmatpush2.msra.mxu0 0.0
    %161 = vmatprep.mubr.f32.mxu0 0.0
    %162 = vmatmul.mubr.f32.gmra.mxu0 0.0
    %v163 = vpop.f32.mrf.mxu0
    %v164 = vadd.f32 0.0, %v163
    %v165 = vpop.f32.mrf.mxu0
    %166 = vdwg.mxu0
    %v167 = vadd.f32 %v80, %v164
    %v168 = vtanh.pop %v167
    %v170 = vlaneseq
    %v171 = vshrl.u32 %v170, 7
    %v172 = vsub.s32 0, %v171
    %v173 = vrot.slane %v60, %v172
    %v175 = vmul.f32 %v168, %v173
    %v177 = vlaneseq
    %v178 = vshrl.u32 %v177, 7
    %v179 = vsub.s32 0, %v178
    %v180 = vrot.slane %v61, %v179
    %v182 = vadd.f32 %v175, %v180
    %183 = vrot.lane.b32.xlu0 %v182, 64
    %v184 = vpop.permute.xlu0 %183
    %185 = vrot.lane.b32.xlu0 %v182, 32
    %v186 = vpop.permute.xlu0 %185
    %187 = vrot.lane.b32.xlu0 %v182, 96
    %v188 = vpop.permute.xlu0 %187
    %v189 = vmul.f32 %v186, %v188
    %v190 = vmul.f32 %v182, 0.0
    %v191 = vadd.f32 %v189, %v190
    %v192 = vtanh.pop %v191
    %v193 = vmul.f32 %v192, %v184
    %194 = vset.pattern.permute.xlu0 1
    %195 = vperm.xlu0 %194, %v57
    %v196 = vpop.permute.xlu0 %195
    %v198 = vmul.f32 %v196, %v71
    %v199 = vadd.f32 %v198, %v78
    %200 = vmatprep.subr.mxu0 0.0
    %201 = vmatpush1.msra.mxu0 %v96
    %202 = vmatprep.subr.mxu0 0.0
    %203 = vmatpush1.msra.mxu0 %v95
    %204 = vmatprep.subr.mxu0 0.0
    %205 = vmatpush1.msra.mxu0 %v94
    %206 = vmatprep.subr.mxu0 0.0
    %207 = vmatpush1.msra.mxu0 %v93
    %208 = vmatprep.subr.mxu0 0.0
    %209 = vmatpush1.msra.mxu0 %v92
    %210 = vmatprep.subr.mxu0 0.0
    %211 = vmatpush1.msra.mxu0 %v91
    %212 = vmatprep.subr.mxu0 0.0
    %213 = vmatpush1.msra.mxu0 %v90
    %214 = vmatprep.subr.mxu0 0.0
    %215 = vmatpush1.msra.mxu0 %v89
    %216 = vmatprep.subr.mxu0 0.0
    %217 = vmatpush1.msra.mxu0 %v88
    %218 = vmatprep.subr.mxu0 0.0
    %219 = vmatpush1.msra.mxu0 %v87
    %220 = vmatprep.subr.mxu0 0.0
    %221 = vmatpush1.msra.mxu0 %v86
    %222 = vmatprep.subr.mxu0 0.0
    %223 = vmatpush1.msra.mxu0 %v85
    %224 = vmatprep.subr.mxu0 0.0
    %225 = vmatpush1.msra.mxu0 %v84
    %226 = vmatprep.subr.mxu0 0.0
    %227 = vmatpush1.msra.mxu0 %v83
    %228 = vmatprep.subr.mxu0 0.0
    %229 = vmatpush1.msra.mxu0 %v82
    %230 = vmatprep.subr.mxu0 0.0
    %231 = vmatpush1.msra.mxu0 %v81
    %232 = vmatprep.subr.mxu0 0.0
    %233 = vmatpush2.msra.mxu0 0.0
    %234 = vmatprep.subr.mxu0 0.0
    %235 = vmatpush2.msra.mxu0 0.0
    %236 = vmatprep.subr.mxu0 0.0
    %237 = vmatpush2.msra.mxu0 0.0
    %238 = vmatprep.subr.mxu0 0.0
    %239 = vmatpush2.msra.mxu0 0.0
    %240 = vmatprep.subr.mxu0 0.0
    %241 = vmatpush2.msra.mxu0 0.0
    %242 = vmatprep.subr.mxu0 0.0
    %243 = vmatpush2.msra.mxu0 0.0
    %244 = vmatprep.subr.mxu0 0.0
    %245 = vmatpush2.msra.mxu0 0.0
    %246 = vmatprep.subr.mxu0 0.0
    %247 = vmatpush2.msra.mxu0 0.0
    %248 = vmatprep.subr.mxu0 0.0
    %249 = vmatpush2.msra.mxu0 0.0
    %250 = vmatprep.subr.mxu0 0.0
    %251 = vmatpush2.msra.mxu0 0.0
    %252 = vmatprep.subr.mxu0 0.0
    %253 = vmatpush2.msra.mxu0 0.0
    %254 = vmatprep.subr.mxu0 0.0
    %255 = vmatpush2.msra.mxu0 0.0
    %256 = vmatprep.subr.mxu0 0.0
    %257 = vmatpush2.msra.mxu0 0.0
    %258 = vmatprep.subr.mxu0 0.0
    %259 = vmatpush2.msra.mxu0 0.0
    %260 = vmatprep.subr.mxu0 0.0
    %261 = vmatpush2.msra.mxu0 0.0
    %262 = vmatprep.subr.mxu0 0.0
    %263 = vmatpush2.msra.mxu0 0.0
    %264 = vmatprep.mubr.f32.mxu0 0.0
    %265 = vmatmul.mubr.f32.gmra.mxu0 %v193
    %v266 = vpop.f32.mrf.mxu0
    %v267 = vadd.f32 0.0, %v266
    %v268 = vpop.f32.mrf.mxu0
    %269 = vdwg.mxu0
    %v270 = vadd.f32 %v199, %v267
    %v271 = vtanh.pop %v270
    %v272 = vmul.f32 %v271, %v173
    %v273 = vadd.f32 %v272, %v180
    %274 = vrot.lane.b32.xlu0 %v273, 64
    %v275 = vpop.permute.xlu0 %274
    %276 = vrot.lane.b32.xlu0 %v273, 32
    %v277 = vpop.permute.xlu0 %276
    %278 = vrot.lane.b32.xlu0 %v273, 96
    %v279 = vpop.permute.xlu0 %278
    %v280 = vmul.f32 %v277, %v279
    %v281 = vmul.f32 %v191, %v273
    %v282 = vadd.f32 %v280, %v281
    %v283 = vtanh.pop %v282
    %v284 = vmul.f32 %v283, %v275
    %285 = vset.pattern.permute.xlu0 2
    %286 = vperm.xlu0 %285, %v57
    %v287 = vpop.permute.xlu0 %286
    %v289 = vmul.f32 %v287, %v71
    %v290 = vadd.f32 %v289, %v78
    %291 = vmatprep.subr.mxu0 0.0
    %292 = vmatpush1.msra.mxu0 %v96
    %293 = vmatprep.subr.mxu0 0.0
    %294 = vmatpush1.msra.mxu0 %v95
    %295 = vmatprep.subr.mxu0 0.0
    %296 = vmatpush1.msra.mxu0 %v94
    %297 = vmatprep.subr.mxu0 0.0
    %298 = vmatpush1.msra.mxu0 %v93
    %299 = vmatprep.subr.mxu0 0.0
    %300 = vmatpush1.msra.mxu0 %v92
    %301 = vmatprep.subr.mxu0 0.0
    %302 = vmatpush1.msra.mxu0 %v91
    %303 = vmatprep.subr.mxu0 0.0
    %304 = vmatpush1.msra.mxu0 %v90
    %305 = vmatprep.subr.mxu0 0.0
    %306 = vmatpush1.msra.mxu0 %v89
    %307 = vmatprep.subr.mxu0 0.0
    %308 = vmatpush1.msra.mxu0 %v88
    %309 = vmatprep.subr.mxu0 0.0
    %310 = vmatpush1.msra.mxu0 %v87
    %311 = vmatprep.subr.mxu0 0.0
    %312 = vmatpush1.msra.mxu0 %v86
    %313 = vmatprep.subr.mxu0 0.0
    %314 = vmatpush1.msra.mxu0 %v85
    %315 = vmatprep.subr.mxu0 0.0
    %316 = vmatpush1.msra.mxu0 %v84
    %317 = vmatprep.subr.mxu0 0.0
    %318 = vmatpush1.msra.mxu0 %v83
    %319 = vmatprep.subr.mxu0 0.0
    %320 = vmatpush1.msra.mxu0 %v82
    %321 = vmatprep.subr.mxu0 0.0
    %322 = vmatpush1.msra.mxu0 %v81
    %323 = vmatprep.subr.mxu0 0.0
    %324 = vmatpush2.msra.mxu0 0.0
    %325 = vmatprep.subr.mxu0 0.0
    %326 = vmatpush2.msra.mxu0 0.0
    %327 = vmatprep.subr.mxu0 0.0
    %328 = vmatpush2.msra.mxu0 0.0
    %329 = vmatprep.subr.mxu0 0.0
    %330 = vmatpush2.msra.mxu0 0.0
    %331 = vmatprep.subr.mxu0 0.0
    %332 = vmatpush2.msra.mxu0 0.0
    %333 = vmatprep.subr.mxu0 0.0
    %334 = vmatpush2.msra.mxu0 0.0
    %335 = vmatprep.subr.mxu0 0.0
    %336 = vmatpush2.msra.mxu0 0.0
    %337 = vmatprep.subr.mxu0 0.0
    %338 = vmatpush2.msra.mxu0 0.0
    %339 = vmatprep.subr.mxu0 0.0
    %340 = vmatpush2.msra.mxu0 0.0
    %341 = vmatprep.subr.mxu0 0.0
    %342 = vmatpush2.msra.mxu0 0.0
    %343 = vmatprep.subr.mxu0 0.0
    %344 = vmatpush2.msra.mxu0 0.0
    %345 = vmatprep.subr.mxu0 0.0
    %346 = vmatpush2.msra.mxu0 0.0
    %347 = vmatprep.subr.mxu0 0.0
    %348 = vmatpush2.msra.mxu0 0.0
    %349 = vmatprep.subr.mxu0 0.0
    %350 = vmatpush2.msra.mxu0 0.0
    %351 = vmatprep.subr.mxu0 0.0
    %352 = vmatpush2.msra.mxu0 0.0
    %353 = vmatprep.subr.mxu0 0.0
    %354 = vmatpush2.msra.mxu0 0.0
    %355 = vmatprep.mubr.f32.mxu0 0.0
    %356 = vmatmul.mubr.f32.gmra.mxu0 %v284
    %v357 = vpop.f32.mrf.mxu0
    %v358 = vadd.f32 0.0, %v357
    %v359 = vpop.f32.mrf.mxu0
    %360 = vdwg.mxu0
    %v361 = vadd.f32 %v290, %v358
    %v362 = vtanh.pop %v361
    %v363 = vmul.f32 %v362, %v173
    %v364 = vadd.f32 %v363, %v180
    %365 = vrot.lane.b32.xlu0 %v364, 64
    %v366 = vpop.permute.xlu0 %365
    %367 = vrot.lane.b32.xlu0 %v364, 32
    %v368 = vpop.permute.xlu0 %367
    %369 = vrot.lane.b32.xlu0 %v364, 96
    %v370 = vpop.permute.xlu0 %369
    %v371 = vmul.f32 %v368, %v370
    %v372 = vmul.f32 %v282, %v364
    %v373 = vadd.f32 %v371, %v372
    %v374 = vtanh.pop %v373
    %v375 = vmul.f32 %v374, %v366
    %376 = vset.pattern.permute.xlu0 3
    %377 = vperm.xlu0 %376, %v57
    %v378 = vpop.permute.xlu0 %377
    %v380 = vmul.f32 %v378, %v71
    %v381 = vadd.f32 %v380, %v78
    %382 = vmatprep.subr.mxu0 0.0
    %383 = vmatpush1.msra.mxu0 %v96
    %384 = vmatprep.subr.mxu0 0.0
    %385 = vmatpush1.msra.mxu0 %v95
    %386 = vmatprep.subr.mxu0 0.0
    %387 = vmatpush1.msra.mxu0 %v94
    %388 = vmatprep.subr.mxu0 0.0
    %389 = vmatpush1.msra.mxu0 %v93
    %390 = vmatprep.subr.mxu0 0.0
    %391 = vmatpush1.msra.mxu0 %v92
    %392 = vmatprep.subr.mxu0 0.0
    %393 = vmatpush1.msra.mxu0 %v91
    %394 = vmatprep.subr.mxu0 0.0
    %395 = vmatpush1.msra.mxu0 %v90
    %396 = vmatprep.subr.mxu0 0.0
    %397 = vmatpush1.msra.mxu0 %v89
    %398 = vmatprep.subr.mxu0 0.0
    %399 = vmatpush1.msra.mxu0 %v88
    %400 = vmatprep.subr.mxu0 0.0
    %401 = vmatpush1.msra.mxu0 %v87
    %402 = vmatprep.subr.mxu0 0.0
    %403 = vmatpush1.msra.mxu0 %v86
    %404 = vmatprep.subr.mxu0 0.0
    %405 = vmatpush1.msra.mxu0 %v85
    %406 = vmatprep.subr.mxu0 0.0
    %407 = vmatpush1.msra.mxu0 %v84
    %408 = vmatprep.subr.mxu0 0.0
    %409 = vmatpush1.msra.mxu0 %v83
    %410 = vmatprep.subr.mxu0 0.0
    %411 = vmatpush1.msra.mxu0 %v82
    %412 = vmatprep.subr.mxu0 0.0
    %413 = vmatpush1.msra.mxu0 %v81
    %414 = vmatprep.subr.mxu0 0.0
    %415 = vmatpush2.msra.mxu0 0.0
    %416 = vmatprep.subr.mxu0 0.0
    %417 = vmatpush2.msra.mxu0 0.0
    %418 = vmatprep.subr.mxu0 0.0
    %419 = vmatpush2.msra.mxu0 0.0
    %420 = vmatprep.subr.mxu0 0.0
    %421 = vmatpush2.msra.mxu0 0.0
    %422 = vmatprep.subr.mxu0 0.0
    %423 = vmatpush2.msra.mxu0 0.0
    %424 = vmatprep.subr.mxu0 0.0
    %425 = vmatpush2.msra.mxu0 0.0
    %426 = vmatprep.subr.mxu0 0.0
    %427 = vmatpush2.msra.mxu0 0.0
    %428 = vmatprep.subr.mxu0 0.0
    %429 = vmatpush2.msra.mxu0 0.0
    %430 = vmatprep.subr.mxu0 0.0
    %431 = vmatpush2.msra.mxu0 0.0
    %432 = vmatprep.subr.mxu0 0.0
    %433 = vmatpush2.msra.mxu0 0.0
    %434 = vmatprep.subr.mxu0 0.0
    %435 = vmatpush2.msra.mxu0 0.0
    %436 = vmatprep.subr.mxu0 0.0
    %437 = vmatpush2.msra.mxu0 0.0
    %438 = vmatprep.subr.mxu0 0.0
    %439 = vmatpush2.msra.mxu0 0.0
    %440 = vmatprep.subr.mxu0 0.0
    %441 = vmatpush2.msra.mxu0 0.0
    %442 = vmatprep.subr.mxu0 0.0
    %443 = vmatpush2.msra.mxu0 0.0
    %444 = vmatprep.subr.mxu0 0.0
    %445 = vmatpush2.msra.mxu0 0.0
    %446 = vmatprep.mubr.f32.mxu0 0.0
    %447 = vmatmul.mubr.f32.gmra.mxu0 %v375
    %v448 = vpop.f32.mrf.mxu0
    %v449 = vadd.f32 0.0, %v448
    %v450 = vpop.f32.mrf.mxu0
    %451 = vdwg.mxu0
    %v452 = vadd.f32 %v381, %v449
    %v453 = vtanh.pop %v452
    %v454 = vmul.f32 %v453, %v173
    %v455 = vadd.f32 %v454, %v180
    %456 = vrot.lane.b32.xlu0 %v455, 64
    %v457 = vpop.permute.xlu0 %456
    %458 = vrot.lane.b32.xlu0 %v455, 32
    %v459 = vpop.permute.xlu0 %458
    %460 = vrot.lane.b32.xlu0 %v455, 96
    %v461 = vpop.permute.xlu0 %460
    %v462 = vmul.f32 %v459, %v461
    %v463 = vmul.f32 %v373, %v455
    %v464 = vadd.f32 %v462, %v463
    %v465 = vtanh.pop %v464
    %v466 = vmul.f32 %v465, %v457
    %467 = vset.pattern.permute.xlu0 4
    %468 = vperm.xlu0 %467, %v57
    %v469 = vpop.permute.xlu0 %468
    %v471 = vmul.f32 %v469, %v71
    %v472 = vadd.f32 %v471, %v78
    %473 = vmatprep.subr.mxu0 0.0
    %474 = vmatpush1.msra.mxu0 %v96
    %475 = vmatprep.subr.mxu0 0.0
    %476 = vmatpush1.msra.mxu0 %v95
    %477 = vmatprep.subr.mxu0 0.0
    %478 = vmatpush1.msra.mxu0 %v94
    %479 = vmatprep.subr.mxu0 0.0
    %480 = vmatpush1.msra.mxu0 %v93
    %481 = vmatprep.subr.mxu0 0.0
    %482 = vmatpush1.msra.mxu0 %v92
    %483 = vmatprep.subr.mxu0 0.0
    %484 = vmatpush1.msra.mxu0 %v91
    %485 = vmatprep.subr.mxu0 0.0
    %486 = vmatpush1.msra.mxu0 %v90
    %487 = vmatprep.subr.mxu0 0.0
    %488 = vmatpush1.msra.mxu0 %v89
    %489 = vmatprep.subr.mxu0 0.0
    %490 = vmatpush1.msra.mxu0 %v88
    %491 = vmatprep.subr.mxu0 0.0
    %492 = vmatpush1.msra.mxu0 %v87
    %493 = vmatprep.subr.mxu0 0.0
    %494 = vmatpush1.msra.mxu0 %v86
    %495 = vmatprep.subr.mxu0 0.0
    %496 = vmatpush1.msra.mxu0 %v85
    %497 = vmatprep.subr.mxu0 0.0
    %498 = vmatpush1.msra.mxu0 %v84
    %499 = vmatprep.subr.mxu0 0.0
    %500 = vmatpush1.msra.mxu0 %v83
    %501 = vmatprep.subr.mxu0 0.0
    %502 = vmatpush1.msra.mxu0 %v82
    %503 = vmatprep.subr.mxu0 0.0
    %504 = vmatpush1.msra.mxu0 %v81
    %505 = vmatprep.subr.mxu0 0.0
    %506 = vmatpush2.msra.mxu0 0.0
    %507 = vmatprep.subr.mxu0 0.0
    %508 = vmatpush2.msra.mxu0 0.0
    %509 = vmatprep.subr.mxu0 0.0
    %510 = vmatpush2.msra.mxu0 0.0
    %511 = vmatprep.subr.mxu0 0.0
    %512 = vmatpush2.msra.mxu0 0.0
    %513 = vmatprep.subr.mxu0 0.0
    %514 = vmatpush2.msra.mxu0 0.0
    %515 = vmatprep.subr.mxu0 0.0
    %516 = vmatpush2.msra.mxu0 0.0
    %517 = vmatprep.subr.mxu0 0.0
    %518 = vmatpush2.msra.mxu0 0.0
    %519 = vmatprep.subr.mxu0 0.0
    %520 = vmatpush2.msra.mxu0 0.0
    %521 = vmatprep.subr.mxu0 0.0
    %522 = vmatpush2.msra.mxu0 0.0
    %523 = vmatprep.subr.mxu0 0.0
    %524 = vmatpush2.msra.mxu0 0.0
    %525 = vmatprep.subr.mxu0 0.0
    %526 = vmatpush2.msra.mxu0 0.0
    %527 = vmatprep.subr.mxu0 0.0
    %528 = vmatpush2.msra.mxu0 0.0
    %529 = vmatprep.subr.mxu0 0.0
    %530 = vmatpush2.msra.mxu0 0.0
    %531 = vmatprep.subr.mxu0 0.0
    %532 = vmatpush2.msra.mxu0 0.0
    %533 = vmatprep.subr.mxu0 0.0
    %534 = vmatpush2.msra.mxu0 0.0
    %535 = vmatprep.subr.mxu0 0.0
    %536 = vmatpush2.msra.mxu0 0.0
    %537 = vmatprep.mubr.f32.mxu0 0.0
    %538 = vmatmul.mubr.f32.gmra.mxu0 %v466
    %v539 = vpop.f32.mrf.mxu0
    %v540 = vadd.f32 0.0, %v539
    %v541 = vpop.f32.mrf.mxu0
    %542 = vdwg.mxu0
    %v543 = vadd.f32 %v472, %v540
    %v544 = vtanh.pop %v543
    %v545 = vmul.f32 %v544, %v173
    %v546 = vadd.f32 %v545, %v180
    %547 = vrot.lane.b32.xlu0 %v546, 64
    %v548 = vpop.permute.xlu0 %547
    %549 = vrot.lane.b32.xlu0 %v546, 32
    %v550 = vpop.permute.xlu0 %549
    %551 = vrot.lane.b32.xlu0 %v546, 96
    %v552 = vpop.permute.xlu0 %551
    %v553 = vmul.f32 %v550, %v552
    %v554 = vmul.f32 %v464, %v546
    %v555 = vadd.f32 %v553, %v554
    %v556 = vtanh.pop %v555
    %v557 = vmul.f32 %v556, %v548
    %558 = vset.pattern.permute.xlu0 5
    %559 = vperm.xlu0 %558, %v57
    %v560 = vpop.permute.xlu0 %559
    %v562 = vmul.f32 %v560, %v71
    %v563 = vadd.f32 %v562, %v78
    %564 = vmatprep.subr.mxu0 0.0
    %565 = vmatpush1.msra.mxu0 %v96
    %566 = vmatprep.subr.mxu0 0.0
    %567 = vmatpush1.msra.mxu0 %v95
    %568 = vmatprep.subr.mxu0 0.0
    %569 = vmatpush1.msra.mxu0 %v94
    %570 = vmatprep.subr.mxu0 0.0
    %571 = vmatpush1.msra.mxu0 %v93
    %572 = vmatprep.subr.mxu0 0.0
    %573 = vmatpush1.msra.mxu0 %v92
    %574 = vmatprep.subr.mxu0 0.0
    %575 = vmatpush1.msra.mxu0 %v91
    %576 = vmatprep.subr.mxu0 0.0
    %577 = vmatpush1.msra.mxu0 %v90
    %578 = vmatprep.subr.mxu0 0.0
    %579 = vmatpush1.msra.mxu0 %v89
    %580 = vmatprep.subr.mxu0 0.0
    %581 = vmatpush1.msra.mxu0 %v88
    %582 = vmatprep.subr.mxu0 0.0
    %583 = vmatpush1.msra.mxu0 %v87
    %584 = vmatprep.subr.mxu0 0.0
    %585 = vmatpush1.msra.mxu0 %v86
    %586 = vmatprep.subr.mxu0 0.0
    %587 = vmatpush1.msra.mxu0 %v85
    %588 = vmatprep.subr.mxu0 0.0
    %589 = vmatpush1.msra.mxu0 %v84
    %590 = vmatprep.subr.mxu0 0.0
    %591 = vmatpush1.msra.mxu0 %v83
    %592 = vmatprep.subr.mxu0 0.0
    %593 = vmatpush1.msra.mxu0 %v82
    %594 = vmatprep.subr.mxu0 0.0
    %595 = vmatpush1.msra.mxu0 %v81
    %596 = vmatprep.subr.mxu0 0.0
    %597 = vmatpush2.msra.mxu0 0.0
    %598 = vmatprep.subr.mxu0 0.0
    %599 = vmatpush2.msra.mxu0 0.0
    %600 = vmatprep.subr.mxu0 0.0
    %601 = vmatpush2.msra.mxu0 0.0
    %602 = vmatprep.subr.mxu0 0.0
    %603 = vmatpush2.msra.mxu0 0.0
    %604 = vmatprep.subr.mxu0 0.0
    %605 = vmatpush2.msra.mxu0 0.0
    %606 = vmatprep.subr.mxu0 0.0
    %607 = vmatpush2.msra.mxu0 0.0
    %608 = vmatprep.subr.mxu0 0.0
    %609 = vmatpush2.msra.mxu0 0.0
    %610 = vmatprep.subr.mxu0 0.0
    %611 = vmatpush2.msra.mxu0 0.0
    %612 = vmatprep.subr.mxu0 0.0
    %613 = vmatpush2.msra.mxu0 0.0
    %614 = vmatprep.subr.mxu0 0.0
    %615 = vmatpush2.msra.mxu0 0.0
    %616 = vmatprep.subr.mxu0 0.0
    %617 = vmatpush2.msra.mxu0 0.0
    %618 = vmatprep.subr.mxu0 0.0
    %619 = vmatpush2.msra.mxu0 0.0
    %620 = vmatprep.subr.mxu0 0.0
    %621 = vmatpush2.msra.mxu0 0.0
    %622 = vmatprep.subr.mxu0 0.0
    %623 = vmatpush2.msra.mxu0 0.0
    %624 = vmatprep.subr.mxu0 0.0
    %625 = vmatpush2.msra.mxu0 0.0
    %626 = vmatprep.subr.mxu0 0.0
    %627 = vmatpush2.msra.mxu0 0.0
    %628 = vmatprep.mubr.f32.mxu0 0.0
    %629 = vmatmul.mubr.f32.gmra.mxu0 %v557
    %v630 = vpop.f32.mrf.mxu0
    %v631 = vadd.f32 0.0, %v630
    %v632 = vpop.f32.mrf.mxu0
    %633 = vdwg.mxu0
    %v634 = vadd.f32 %v563, %v631
    %v635 = vtanh.pop %v634
    %v636 = vmul.f32 %v635, %v173
    %v637 = vadd.f32 %v636, %v180
    %638 = vrot.lane.b32.xlu0 %v637, 64
    %v639 = vpop.permute.xlu0 %638
    %640 = vrot.lane.b32.xlu0 %v637, 32
    %v641 = vpop.permute.xlu0 %640
    %642 = vrot.lane.b32.xlu0 %v637, 96
    %v643 = vpop.permute.xlu0 %642
    %v644 = vmul.f32 %v641, %v643
    %v645 = vmul.f32 %v555, %v637
    %v646 = vadd.f32 %v644, %v645
    %v647 = vtanh.pop %v646
    %v648 = vmul.f32 %v647, %v639
    %649 = vset.pattern.permute.xlu0 6
    %650 = vperm.xlu0 %649, %v57
    %v651 = vpop.permute.xlu0 %650
    %v653 = vmul.f32 %v651, %v71
    %v654 = vadd.f32 %v653, %v78
    %655 = vmatprep.subr.mxu0 0.0
    %656 = vmatpush1.msra.mxu0 %v96
    %657 = vmatprep.subr.mxu0 0.0
    %658 = vmatpush1.msra.mxu0 %v95
    %659 = vmatprep.subr.mxu0 0.0
    %660 = vmatpush1.msra.mxu0 %v94
    %661 = vmatprep.subr.mxu0 0.0
    %662 = vmatpush1.msra.mxu0 %v93
    %663 = vmatprep.subr.mxu0 0.0
    %664 = vmatpush1.msra.mxu0 %v92
    %665 = vmatprep.subr.mxu0 0.0
    %666 = vmatpush1.msra.mxu0 %v91
    %667 = vmatprep.subr.mxu0 0.0
    %668 = vmatpush1.msra.mxu0 %v90
    %669 = vmatprep.subr.mxu0 0.0
    %670 = vmatpush1.msra.mxu0 %v89
    %671 = vmatprep.subr.mxu0 0.0
    %672 = vmatpush1.msra.mxu0 %v88
    %673 = vmatprep.subr.mxu0 0.0
    %674 = vmatpush1.msra.mxu0 %v87
    %675 = vmatprep.subr.mxu0 0.0
    %676 = vmatpush1.msra.mxu0 %v86
    %677 = vmatprep.subr.mxu0 0.0
    %678 = vmatpush1.msra.mxu0 %v85
    %679 = vmatprep.subr.mxu0 0.0
    %680 = vmatpush1.msra.mxu0 %v84
    %681 = vmatprep.subr.mxu0 0.0
    %682 = vmatpush1.msra.mxu0 %v83
    %683 = vmatprep.subr.mxu0 0.0
    %684 = vmatpush1.msra.mxu0 %v82
    %685 = vmatprep.subr.mxu0 0.0
    %686 = vmatpush1.msra.mxu0 %v81
    %687 = vmatprep.subr.mxu0 0.0
    %688 = vmatpush2.msra.mxu0 0.0
    %689 = vmatprep.subr.mxu0 0.0
    %690 = vmatpush2.msra.mxu0 0.0
    %691 = vmatprep.subr.mxu0 0.0
    %692 = vmatpush2.msra.mxu0 0.0
    %693 = vmatprep.subr.mxu0 0.0
    %694 = vmatpush2.msra.mxu0 0.0
    %695 = vmatprep.subr.mxu0 0.0
    %696 = vmatpush2.msra.mxu0 0.0
    %697 = vmatprep.subr.mxu0 0.0
    %698 = vmatpush2.msra.mxu0 0.0
    %699 = vmatprep.subr.mxu0 0.0
    %700 = vmatpush2.msra.mxu0 0.0
    %701 = vmatprep.subr.mxu0 0.0
    %702 = vmatpush2.msra.mxu0 0.0
    %703 = vmatprep.subr.mxu0 0.0
    %704 = vmatpush2.msra.mxu0 0.0
    %705 = vmatprep.subr.mxu0 0.0
    %706 = vmatpush2.msra.mxu0 0.0
    %707 = vmatprep.subr.mxu0 0.0
    %708 = vmatpush2.msra.mxu0 0.0
    %709 = vmatprep.subr.mxu0 0.0
    %710 = vmatpush2.msra.mxu0 0.0
    %711 = vmatprep.subr.mxu0 0.0
    %712 = vmatpush2.msra.mxu0 0.0
    %713 = vmatprep.subr.mxu0 0.0
    %714 = vmatpush2.msra.mxu0 0.0
    %715 = vmatprep.subr.mxu0 0.0
    %716 = vmatpush2.msra.mxu0 0.0
    %717 = vmatprep.subr.mxu0 0.0
    %718 = vmatpush2.msra.mxu0 0.0
    %719 = vmatprep.mubr.f32.mxu0 0.0
    %720 = vmatmul.mubr.f32.gmra.mxu0 %v648
    %v721 = vpop.f32.mrf.mxu0
    %v722 = vadd.f32 0.0, %v721
    %v723 = vpop.f32.mrf.mxu0
    %724 = vdwg.mxu0
    %v725 = vadd.f32 %v654, %v722
    %v726 = vtanh.pop %v725
    %v727 = vmul.f32 %v726, %v173
    %v728 = vadd.f32 %v727, %v180
    %729 = vrot.lane.b32.xlu0 %v728, 64
    %v730 = vpop.permute.xlu0 %729
    %731 = vrot.lane.b32.xlu0 %v728, 32
    %v732 = vpop.permute.xlu0 %731
    %733 = vrot.lane.b32.xlu0 %v728, 96
    %v734 = vpop.permute.xlu0 %733
    %v735 = vmul.f32 %v732, %v734
    %v736 = vmul.f32 %v646, %v728
    %v737 = vadd.f32 %v735, %v736
    %v738 = vtanh.pop %v737
    %v739 = vmul.f32 %v738, %v730
    %740 = vset.pattern.permute.xlu0 7
    %741 = vperm.xlu0 %740, %v57
    %v742 = vpop.permute.xlu0 %741
    %v744 = vmul.f32 %v742, %v71
    %v745 = vadd.f32 %v744, %v78
    %746 = vmatprep.subr.mxu0 0.0
    %747 = vmatpush1.msra.mxu0 %v96
    %748 = vmatprep.subr.mxu0 0.0
    %749 = vmatpush1.msra.mxu0 %v95
    %750 = vmatprep.subr.mxu0 0.0
    %751 = vmatpush1.msra.mxu0 %v94
    %752 = vmatprep.subr.mxu0 0.0
    %753 = vmatpush1.msra.mxu0 %v93
    %754 = vmatprep.subr.mxu0 0.0
    %755 = vmatpush1.msra.mxu0 %v92
    %756 = vmatprep.subr.mxu0 0.0
    %757 = vmatpush1.msra.mxu0 %v91
    %758 = vmatprep.subr.mxu0 0.0
    %759 = vmatpush1.msra.mxu0 %v90
    %760 = vmatprep.subr.mxu0 0.0
    %761 = vmatpush1.msra.mxu0 %v89
    %762 = vmatprep.subr.mxu0 0.0
    %763 = vmatpush1.msra.mxu0 %v88
    %764 = vmatprep.subr.mxu0 0.0
    %765 = vmatpush1.msra.mxu0 %v87
    %766 = vmatprep.subr.mxu0 0.0
    %767 = vmatpush1.msra.mxu0 %v86
    %768 = vmatprep.subr.mxu0 0.0
    %769 = vmatpush1.msra.mxu0 %v85
    %770 = vmatprep.subr.mxu0 0.0
    %771 = vmatpush1.msra.mxu0 %v84
    %772 = vmatprep.subr.mxu0 0.0
    %773 = vmatpush1.msra.mxu0 %v83
    %774 = vmatprep.subr.mxu0 0.0
    %775 = vmatpush1.msra.mxu0 %v82
    %776 = vmatprep.subr.mxu0 0.0
    %777 = vmatpush1.msra.mxu0 %v81
    %778 = vmatprep.subr.mxu0 0.0
    %779 = vmatpush2.msra.mxu0 0.0
    %780 = vmatprep.subr.mxu0 0.0
    %781 = vmatpush2.msra.mxu0 0.0
    %782 = vmatprep.subr.mxu0 0.0
    %783 = vmatpush2.msra.mxu0 0.0
    %784 = vmatprep.subr.mxu0 0.0
    %785 = vmatpush2.msra.mxu0 0.0
    %786 = vmatprep.subr.mxu0 0.0
    %787 = vmatpush2.msra.mxu0 0.0
    %788 = vmatprep.subr.mxu0 0.0
    %789 = vmatpush2.msra.mxu0 0.0
    %790 = vmatprep.subr.mxu0 0.0
    %791 = vmatpush2.msra.mxu0 0.0
    %792 = vmatprep.subr.mxu0 0.0
    %793 = vmatpush2.msra.mxu0 0.0
    %794 = vmatprep.subr.mxu0 0.0
    %795 = vmatpush2.msra.mxu0 0.0
    %796 = vmatprep.subr.mxu0 0.0
    %797 = vmatpush2.msra.mxu0 0.0
    %798 = vmatprep.subr.mxu0 0.0
    %799 = vmatpush2.msra.mxu0 0.0
    %800 = vmatprep.subr.mxu0 0.0
    %801 = vmatpush2.msra.mxu0 0.0
    %802 = vmatprep.subr.mxu0 0.0
    %803 = vmatpush2.msra.mxu0 0.0
    %804 = vmatprep.subr.mxu0 0.0
    %805 = vmatpush2.msra.mxu0 0.0
    %806 = vmatprep.subr.mxu0 0.0
    %807 = vmatpush2.msra.mxu0 0.0
    %808 = vmatprep.subr.mxu0 0.0
    %809 = vmatpush2.msra.mxu0 0.0
    %810 = vmatprep.mubr.f32.mxu0 0.0
    %811 = vmatmul.mubr.f32.gmra.mxu0 %v739
    %v812 = vpop.f32.mrf.mxu0
    %v813 = vadd.f32 0.0, %v812
    %v814 = vpop.f32.mrf.mxu0
    %815 = vdwg.mxu0
    %v816 = vadd.f32 %v745, %v813
    %v817 = vtanh.pop %v816
    %v818 = vmul.f32 %v817, %v173
    %v819 = vadd.f32 %v818, %v180
    %820 = vrot.lane.b32.xlu0 %v819, 64
    %v821 = vpop.permute.xlu0 %820
    %822 = vrot.lane.b32.xlu0 %v819, 32
    %v823 = vpop.permute.xlu0 %822
    %824 = vrot.lane.b32.xlu0 %v819, 96
    %v825 = vpop.permute.xlu0 %824
    %v826 = vmul.f32 %v823, %v825
    %v827 = vmul.f32 %v737, %v819
    %v828 = vadd.f32 %v826, %v827
    %v829 = vtanh.pop %v828
    %v830 = vmul.f32 %v829, %v821
    %v831 = vld [vmem:[#allocation4] sm:$0xff]
    %v832 = vld [vmem:[#allocation4 + $0x8] sm:$0xff]
    %v833 = vld [vmem:[#allocation4 + $0x10] sm:$0xff]
    %v834 = vld [vmem:[#allocation4 + $0x18] sm:$0xff]
    %v835 = vld [vmem:[#allocation4 + $0x20] sm:$0xff]
    %v836 = vld [vmem:[#allocation4 + $0x28] sm:$0xff]
    %v837 = vld [vmem:[#allocation4 + $0x30] sm:$0xff]
    %v838 = vld [vmem:[#allocation4 + $0x38] sm:$0xff]
    %v839 = vld [vmem:[#allocation4 + $0x40] sm:$0xff]
    %v840 = vld [vmem:[#allocation4 + $0x48] sm:$0xff]
    %v841 = vld [vmem:[#allocation4 + $0x50] sm:$0xff]
    %v842 = vld [vmem:[#allocation4 + $0x58] sm:$0xff]
    %v843 = vld [vmem:[#allocation4 + $0x60] sm:$0xff]
    %v844 = vld [vmem:[#allocation4 + $0x68] sm:$0xff]
    %v845 = vld [vmem:[#allocation4 + $0x70] sm:$0xff]
    %v846 = vld [vmem:[#allocation4 + $0x78] sm:$0xff]
    %v847 = vld [vmem:[%s7] sm:$0x1]
    %v849 = vlaneseq
    %v850 = vshrl.u32 %v849, 7
    %v851 = vsub.s32 0, %v850
    %v852 = vrot.slane %v847, %v851
    %854 = vmatprep.subr.mxu0 0.0
    %855 = vmatpush1.msra.mxu0 %v846
    %856 = vmatprep.subr.mxu0 0.0
    %857 = vmatpush1.msra.mxu0 %v845
    %858 = vmatprep.subr.mxu0 0.0
    %859 = vmatpush1.msra.mxu0 %v844
    %860 = vmatprep.subr.mxu0 0.0
    %861 = vmatpush1.msra.mxu0 %v843
    %862 = vmatprep.subr.mxu0 0.0
    %863 = vmatpush1.msra.mxu0 %v842
    %864 = vmatprep.subr.mxu0 0.0
    %865 = vmatpush1.msra.mxu0 %v841
    %866 = vmatprep.subr.mxu0 0.0
    %867 = vmatpush1.msra.mxu0 %v840
    %868 = vmatprep.subr.mxu0 0.0
    %869 = vmatpush1.msra.mxu0 %v839
    %870 = vmatprep.subr.mxu0 0.0
    %871 = vmatpush1.msra.mxu0 %v838
    %872 = vmatprep.subr.mxu0 0.0
    %873 = vmatpush1.msra.mxu0 %v837
    %874 = vmatprep.subr.mxu0 0.0
    %875 = vmatpush1.msra.mxu0 %v836
    %876 = vmatprep.subr.mxu0 0.0
    %877 = vmatpush1.msra.mxu0 %v835
    %878 = vmatprep.subr.mxu0 0.0
    %879 = vmatpush1.msra.mxu0 %v834
    %880 = vmatprep.subr.mxu0 0.0
    %881 = vmatpush1.msra.mxu0 %v833
    %882 = vmatprep.subr.mxu0 0.0
    %883 = vmatpush1.msra.mxu0 %v832
    %884 = vmatprep.subr.mxu0 0.0
    %885 = vmatpush1.msra.mxu0 %v831
    %886 = vmatprep.subr.mxu0 0.0
    %887 = vmatpush2.msra.mxu0 0.0
    %888 = vmatprep.subr.mxu0 0.0
    %889 = vmatpush2.msra.mxu0 0.0
    %890 = vmatprep.subr.mxu0 0.0
    %891 = vmatpush2.msra.mxu0 0.0
    %892 = vmatprep.subr.mxu0 0.0
    %893 = vmatpush2.msra.mxu0 0.0
    %894 = vmatprep.subr.mxu0 0.0
    %895 = vmatpush2.msra.mxu0 0.0
    %896 = vmatprep.subr.mxu0 0.0
    %897 = vmatpush2.msra.mxu0 0.0
    %898 = vmatprep.subr.mxu0 0.0
    %899 = vmatpush2.msra.mxu0 0.0
    %900 = vmatprep.subr.mxu0 0.0
    %901 = vmatpush2.msra.mxu0 0.0
    %902 = vmatprep.subr.mxu0 0.0
    %903 = vmatpush2.msra.mxu0 0.0
    %904 = vmatprep.subr.mxu0 0.0
    %905 = vmatpush2.msra.mxu0 0.0
    %906 = vmatprep.subr.mxu0 0.0
    %907 = vmatpush2.msra.mxu0 0.0
    %908 = vmatprep.subr.mxu0 0.0
    %909 = vmatpush2.msra.mxu0 0.0
    %910 = vmatprep.subr.mxu0 0.0
    %911 = vmatpush2.msra.mxu0 0.0
    %912 = vmatprep.subr.mxu0 0.0
    %913 = vmatpush2.msra.mxu0 0.0
    %914 = vmatprep.subr.mxu0 0.0
    %915 = vmatpush2.msra.mxu0 0.0
    %916 = vmatprep.subr.mxu0 0.0
    %917 = vmatpush2.msra.mxu0 0.0
    %918 = vmatprep.mubr.f32.mxu0 0.0
    %919 = vmatmul.mubr.f32.gmra.mxu0 %v830
    %v920 = vpop.f32.mrf.mxu0
    %v921 = vadd.f32 %v852, %v920
    %v922 = vpop.f32.mrf.mxu0
    %923 = vdwg.mxu0
    %924 = vst [vmem:[%s8] sm:$0xff] %v921
    // Predicated region
    $region42: #{lstm_forward.1} parent=1 // pred_check
      _
    $region43: #{lstm_forward.1} parent=1 // pred_check_branch
      %926 = sbr.rel (0) target = $region45
    $region44: #{lstm_forward.1} parent=1 // pred_region
      _
    $region45: #{lstm_forward.1} parent=1 // pred_fallthru
      _
    // Predicated region
    $region46: #{lstm_forward.1} parent=1 // pred_check
      _
    $region47: #{lstm_forward.1} parent=1 // pred_check_branch
      %928 = sbr.rel (0) target = $region49
    $region48: #{lstm_forward.1} parent=1 // pred_region
      _
    $region49: #{lstm_forward.1} parent=1 // pred_fallthru
      _
    %929 = vsyncpa [#allocation3], 1
    %930 = vsyncpa [#allocation5], 1

</llo_original>
